<compile_context>
chip_gen: v7x
topology: tpu7x:2x2x1
jax: 0.10.0
libtpu: 0.0.40
codegen_flags: <defaults>
</compile_context>

<pallas_src>
import functools

import jax
import jax.numpy as jnp
from jax.experimental import pallas as pl
from jax.experimental.pallas import tpu as pltpu

_LANE = 128


# --------------------------------------------------------------------------
# Tiling helpers.
# --------------------------------------------------------------------------
def _sublane_unit(itemsize: int) -> int:
    """Minimum second-to-last block dim for this dtype (8/16/32)."""
    return max(8, 32 // max(itemsize, 1))


def _vmem_capacity_bytes() -> int:
    """Generation-aware VMEM size; safe fallback if the query is unavailable."""
    try:
        return int(pltpu.get_tpu_info().vmem_capacity_bytes)
    except Exception:
        return 128 << 20


def _pick_tile(dim: int, unit: int, cap: int) -> int:
    """Largest divisor of `dim` that is a multiple of `unit` and <= cap.

    Falls back to the full dimension (always layout-legal) if none exists.
    """
    if dim <= cap:
        return dim
    if dim % unit:
        return dim
    for t in range(min(cap, dim), unit - 1, -1):
        if dim % t == 0 and t % unit == 0:
            return t
    return dim


def _split_for_megacore(dim: int, unit: int, tile: int) -> int:
    """If the only 'parallel' grid axis would have extent 1, shrink the tile
    so it has extent >= 2 (otherwise one v7x TensorCore sits idle)."""
    if dim // tile >= 2:
        return tile
    for t in range(dim // 2, unit - 1, -1):
        if dim % t == 0 and t % unit == 0:
            return t
    # TODO(synk): for channel counts too small to split (e.g. the C=3 stem on
    # v7x, two-pass path) a leading size-2 parallel axis over the (B,HW)
    # reduction (combined in the XLA epilogue) would be needed; not done.
    return tile


def _choose_tiles(C, HW, itemsize, sub_unit, block_cap):
    """Pick (channel, spatial) tiles with block bytes <= block_cap."""
    min_c = min(C, sub_unit)
    if HW % _LANE != 0 or HW * min_c * itemsize <= block_cap:
        # Full-extent spatial block: lane-dense stores, no tail masking.
        # TODO(synk): a huge HW that is not 128-divisible would need a cdiv
        # grid with tail masking to stay under the cap; not implemented.
        hwt = HW
    else:
        hwt = _pick_tile(HW, _LANE, max(_LANE, block_cap // (min_c * itemsize)))
    ct_cap = max(sub_unit, (block_cap // max(hwt * itemsize, 1)) // sub_unit * sub_unit)
    ct = _pick_tile(C, sub_unit, ct_cap)
    return ct, hwt


# --------------------------------------------------------------------------
# Fused single-pass kernel: batch stats + Chan combine + normalize, one read.
# Grid = (C_tiles,), each step owns a full (B, ct, HW) channel slab.
# --------------------------------------------------------------------------
def _fused_kernel(x_ref, rmean_ref, rvar_ref, rcount_ref,
                  y_ref, mean_ref, var_ref, *, n_batch, n_elem):
    x = x_ref[...].astype(jnp.float32)                       # (B, ct, HW)
    inv_n = 1.0 / float(n_elem)
    b_mean = jnp.sum(jnp.sum(x, axis=-1, keepdims=True), axis=0) * inv_n   # (ct,1)
    d = x - b_mean
    b_var = jnp.sum(jnp.sum(d * d, axis=-1, keepdims=True), axis=0) * inv_n

    # Chan et al. combine with the running buffers (same math as the module).
    r_count = rcount_ref[0]
    r_mean = rmean_ref[...]
    r_var = rvar_ref[...]
    n_new = float(n_batch)
    tot = r_count + n_new
    inv_tot = 1.0 / tot
    u_mean = (r_count * r_mean + n_new * b_mean) * inv_tot
    m2 = (r_var * r_count + b_var * n_new
          + (b_mean - r_mean) ** 2 * (r_count * n_new * inv_tot))
    u_var = m2 * inv_tot

    inv_std = jax.lax.rsqrt(jnp.maximum(u_var, 0.01))
    y_ref[...] = ((x - u_mean) * inv_std).astype(y_ref.dtype)
    mean_ref[...] = u_mean
    var_ref[...] = u_var


def _fused_forward(x3, r_mean_c, r_var_c, r_count_s, ct, vmem_limit):
    B, C, HW = x3.shape
    kernel = functools.partial(_fused_kernel, n_batch=B, n_elem=B * HW)
    return pl.pallas_call(
        kernel,
        out_shape=(
            jax.ShapeDtypeStruct((B, C, HW), x3.dtype),
            jax.ShapeDtypeStruct((C, 1), jnp.float32),
            jax.ShapeDtypeStruct((C, 1), jnp.float32),
        ),
        grid=(C // ct,),
        in_specs=[
            pl.BlockSpec((B, ct, HW), lambda c: (0, c, 0)),
            pl.BlockSpec((ct, 1), lambda c: (c, 0)),
            pl.BlockSpec((ct, 1), lambda c: (c, 0)),
            pl.BlockSpec(memory_space=pltpu.MemorySpace.SMEM),
        ],
        out_specs=(
            pl.BlockSpec((B, ct, HW), lambda c: (0, c, 0)),
            pl.BlockSpec((ct, 1), lambda c: (c, 0)),
            pl.BlockSpec((ct, 1), lambda c: (c, 0)),
        ),
        compiler_params=pltpu.CompilerParams(
            dimension_semantics=("parallel",),
            vmem_limit_bytes=vmem_limit,
        ),
    )(x3, r_mean_c, r_var_c, r_count_s)


# --------------------------------------------------------------------------
# Two-pass fallback, kernel 1: per-channel batch stats, single streamed read.
# Grid = (C_tiles, B, HW_tiles); (B, HW_tiles) are the sequential reduction
# axes; partial tiles are combined with Chan's parallel-variance formula
# directly in the resident (C,1) output blocks.
# --------------------------------------------------------------------------
def _stats_kernel(x_ref, mean_ref, var_ref, *, nh, tile_n, n_steps):
    b = pl.program_id(1)
    h = pl.program_id(2)
    step = b * nh + h                 # row-major linearization of (b, h)

    x = x_ref[0].astype(jnp.float32)                        # (ct, hwt)
    t_mean = jnp.mean(x, axis=-1, keepdims=True)            # (ct, 1)
    t_m2 = jnp.sum((x - t_mean) ** 2, axis=-1, keepdims=True)

    @pl.when(step == 0)
    def _():
        mean_ref[...] = t_mean
        var_ref[...] = t_m2

    @pl.when(step > 0)
    def _():
        cnt_a = (step * tile_n).astype(jnp.float32)          # elements seen so far
        frac = tile_n / (cnt_a + tile_n)
        mean_a = mean_ref[...]
        delta = t_mean - mean_a
        mean_ref[...] = mean_a + delta * frac
        var_ref[...] = var_ref[...] + t_m2 + (delta * delta) * (cnt_a * frac)

    @pl.when(step == n_steps - 1)
    def _():
        var_ref[...] = var_ref[...] * (1.0 / float(n_steps * tile_n))


def _batch_stats(x3, ct, hwt, vmem_limit):
    B, C, HW = x3.shape
    nc, nh = C // ct, HW // hwt
    kernel = functools.partial(_stats_kernel, nh=nh, tile_n=hwt, n_steps=B * nh)
    return pl.pallas_call(
        kernel,
        out_shape=(
            jax.ShapeDtypeStruct((C, 1), jnp.float32),
            jax.ShapeDtypeStruct((C, 1), jnp.float32),
        ),
        grid=(nc, B, nh),
        in_specs=[pl.BlockSpec((1, ct, hwt), lambda c, b, h: (b, c, h))],
        out_specs=(
            pl.BlockSpec((ct, 1), lambda c, b, h: (c, 0)),
            pl.BlockSpec((ct, 1), lambda c, b, h: (c, 0)),
        ),
        compiler_params=pltpu.CompilerParams(
            dimension_semantics=("parallel", "arbitrary", "arbitrary"),
            vmem_limit_bytes=vmem_limit,
        ),
    )(x3)


# --------------------------------------------------------------------------
# Two-pass fallback, kernel 2: y = x * scale + bias streamed over NCHW tiles.
# All grid axes independent -> all "parallel" (v7x megacore even for B==1).
# --------------------------------------------------------------------------
def _normalize_kernel(x_ref, scale_ref, bias_ref, o_ref):
    o_ref[...] = (x_ref[...] * scale_ref[...] + bias_ref[...]).astype(o_ref.dtype)


def _normalize(x3, scale_c, bias_c, ct, hwt, vmem_limit):
    B, C, HW = x3.shape
    return pl.pallas_call(
        _normalize_kernel,
        out_shape=jax.ShapeDtypeStruct((B, C, HW), x3.dtype),
        grid=(B, C // ct, HW // hwt),
        in_specs=[
            pl.BlockSpec((1, ct, hwt), lambda b, c, h: (b, c, h)),
            pl.BlockSpec((ct, 1), lambda b, c, h: (c, 0)),
            pl.BlockSpec((ct, 1), lambda b, c, h: (c, 0)),
        ],
        out_specs=pl.BlockSpec((1, ct, hwt), lambda b, c, h: (b, c, h)),
        compiler_params=pltpu.CompilerParams(
            dimension_semantics=("parallel", "parallel", "parallel"),
            vmem_limit_bytes=vmem_limit,
        ),
    )(x3, scale_c, bias_c)


# --------------------------------------------------------------------------
# Module forward (training mode by default, like a fresh nn.Module).
# Running buffers are passed/returned explicitly (JAX is functional).
# --------------------------------------------------------------------------
def running_mean_and_var_forward(x, r_mean, r_var, r_count, training=True,
                                 force_two_pass=False):
    """x: (B, C, H, W); r_mean/r_var: (1, C, 1, 1) f32; r_count: scalar f32."""
    B, C, H, W = x.shape
    HW = H * W
    x3 = x.reshape(B, C, HW)          # free view of NCHW; no transpose
    itemsize = jnp.dtype(x.dtype).itemsize
    sub_unit = _sublane_unit(itemsize)

    # Generation-aware caps: v7x (<=64 MiB VMEM) vs v5e/v6e (128 MiB VMEM).
    vmem_cap = _vmem_capacity_bytes()
    small_vmem = vmem_cap <= (64 << 20)
    block_cap = (4 << 20) if small_vmem else (8 << 20)
    vmem_ceiling = (48 << 20) if small_vmem else int(min(vmem_cap, 100 << 20))

    def _vlimit(block_elems):
        # double-buffered native blocks + f32 compute temps + headroom
        need = 4 * block_elems * itemsize + 5 * block_elems * 4 + (2 << 20)
        return int(min(vmem_ceiling, max(16 << 20, need)))

    if training:
        # TODO(synk): torch.distributed all_reduce of mean/var/count has no
        # single-device Pallas equivalent; skipped (world_size == 1).
        n_new = jnp.asarray(float(B), jnp.float32)

        # ---- fused single-pass path: 1 read + 1 write of x ----
        fused_ct = 0
        if not force_two_pass:
            row_bytes = B * HW * itemsize          # one channel across the batch
            cap_ct = block_cap // row_bytes if row_bytes else 0
            if cap_ct >= 1:
                cand = _pick_tile(C, sub_unit, cap_ct)
                if cand * row_bytes <= block_cap:
                    fused_ct = _split_for_megacore(C, sub_unit, cand)

        if fused_ct:
            y3, mean_c, var_c = _fused_forward(
                x3,
                r_mean.reshape(C, 1).astype(jnp.float32),
                r_var.reshape(C, 1).astype(jnp.float32),
                jnp.reshape(r_count, (1,)).astype(jnp.float32),
                fused_ct,
                _vlimit(B * fused_ct * HW))
            return (y3.reshape(B, C, H, W),
                    mean_c.reshape(1, C, 1, 1),
                    var_c.reshape(1, C, 1, 1),
                    r_count + n_new)

        # ---- two-pass streaming path ----
        ct, hwt = _choose_tiles(C, HW, itemsize, sub_unit, block_cap)
        stats_ct = _split_for_megacore(C, sub_unit, ct)
        mean_c, var_c = _batch_stats(x3, stats_ct, hwt, _vlimit(stats_ct * hwt))
        new_mean = mean_c.reshape(1, C, 1, 1)
        new_var = var_c.reshape(1, C, 1, 1)
        tot = r_count + n_new
        M2 = (r_var * r_count + new_var * n_new
              + (new_mean - r_mean) ** 2 * r_count * n_new / tot)
        r_var = M2 / tot
        r_mean = (r_count * r_mean + n_new * new_mean) / tot
        r_count = tot
    else:
        ct, hwt = _choose_tiles(C, HW, itemsize, sub_unit, block_cap)

    # Normalize with the (possibly updated) running statistics.
    inv_stdev = jax.lax.rsqrt(jnp.maximum(r_var, jnp.full_like(r_var, 0.01)))
    scale_c = inv_stdev.reshape(C, 1).astype(jnp.float32)
    bias_c = (-r_mean * inv_stdev).reshape(C, 1).astype(jnp.float32)
    y = _normalize(x3, scale_c, bias_c, ct, hwt, _vlimit(ct * hwt))
    return y.reshape(B, C, H, W), r_mean, r_var, r_count


# --------------------------------------------------------------------------
if __name__ == "__main__":
    B, C, H, W = 2, 4, 16, 16
    key = jax.random.PRNGKey(0)
    x = jax.random.normal(key, (B, C, H, W), dtype=jnp.float32) * 2.0 + 0.5

    # Deterministic buffer init, exactly as in __init__.
    r_mean = jnp.zeros((1, C, 1, 1), jnp.float32)
    r_var = jnp.zeros((1, C, 1, 1), jnp.float32)
    r_count = jnp.zeros((), jnp.float32)

    # Pure-JAX reference for the same forward (training mode, count starts 0).
    x_cf = jnp.transpose(x, (1, 0, 2, 3)).reshape(C, -1)
    ref_mean = jnp.mean(x_cf, axis=-1, keepdims=True)
    ref_var = jnp.mean((x_cf - ref_mean) ** 2, axis=-1, keepdims=True)
    inv = jax.lax.rsqrt(jnp.maximum(ref_var, 0.01))
    y_ref = jnp.transpose(
        ((x_cf - ref_mean) * inv).reshape(C, B, H, W), (1, 0, 2, 3))

    # 1) fused single-pass path (what small/mid layers use).
    y, new_mean, new_var, new_count = running_mean_and_var_forward(
        x, r_mean, r_var, r_count, training=True)
    jax.block_until_ready(y)
    assert jnp.allclose(y, y_ref, atol=1e-5, rtol=1e-5), "fused: y mismatch"
    assert jnp.allclose(new_mean.reshape(C, 1), ref_mean, atol=1e-5)
    assert jnp.allclose(new_var.reshape(C, 1), ref_var, atol=1e-5)
    assert float(new_count) == float(B)

    # 2) two-pass streaming path (what large layers use).
    y2, m2c, v2c, _ = running_mean_and_var_forward(
        x, r_mean, r_var, r_count, training=True, force_two_pass=True)
    jax.block_until_ready(y2)
    assert jnp.allclose(y2, y_ref, atol=1e-5, rtol=1e-5), "two-pass: y mismatch"
    assert jnp.allclose(m2c.reshape(C, 1), ref_mean, atol=1e-5)
    assert jnp.allclose(v2c.reshape(C, 1), ref_var, atol=1e-5)

    # 3) eval mode with the updated buffers reproduces the training output.
    y3, _, _, _ = running_mean_and_var_forward(
        x, new_mean, new_var, new_count, training=False)
    jax.block_until_ready(y3)
    assert jnp.allclose(y3, y_ref, atol=1e-5, rtol=1e-5), "eval: y mismatch"

    print("KERNEL_OK")
</pallas_src>

<mosaic_0001>
module attributes {stable_mosaic.version = 11 : i64} {
  func.func @_fused_kernel(%arg0: i32, %arg1: memref<2x4x256xf32, #tpu.memory_space<vmem>>, %arg2: memref<4x1xf32, #tpu.memory_space<vmem>>, %arg3: memref<4x1xf32, #tpu.memory_space<vmem>>, %arg4: memref<1xf32, #tpu.memory_space<smem>>, %arg5: memref<2x4x256xf32, #tpu.memory_space<vmem>>, %arg6: memref<4x1xf32, #tpu.memory_space<vmem>>, %arg7: memref<4x1xf32, #tpu.memory_space<vmem>>) attributes {dimension_semantics = [#tpu.dimension_semantics<parallel>], iteration_bounds = array<i64: 1>, scalar_prefetch = 0 : i64, scratch_operands = 0 : i64, tpu.core_type = #tpu.core_type<tc>, window_params = [{transform_indices = @transform_0, window_bounds = array<i64: 2, 4, 256>}, {transform_indices = @transform_1, window_bounds = array<i64: 4, 1>}, {transform_indices = @transform_2, window_bounds = array<i64: 4, 1>}, {transform_indices = @transform_3, window_bounds = array<i64: 1>}, {transform_indices = @transform_4, window_bounds = array<i64: 2, 4, 256>}, {transform_indices = @transform_5, window_bounds = array<i64: 4, 1>}, {transform_indices = @transform_6, window_bounds = array<i64: 4, 1>}]} {
    %c0 = arith.constant 0 : index
    %c0_0 = arith.constant 0 : index
    %c0_1 = arith.constant 0 : index
    %0 = vector.load %arg1[%c0, %c0_0, %c0_1] : memref<2x4x256xf32, #tpu.memory_space<vmem>>, vector<2x4x256xf32>
    %cst = arith.constant dense<0.000000e+00> : vector<2x4xf32>
    %1 = vector.multi_reduction <add>, %0, %cst [2] : vector<2x4x256xf32> to vector<2x4xf32>
    %2 = vector.shape_cast %1 : vector<2x4xf32> to vector<2x4x1xf32>
    %cst_2 = arith.constant dense<0.000000e+00> : vector<4x1xf32>
    %3 = vector.multi_reduction <add>, %2, %cst_2 [0] : vector<2x4x1xf32> to vector<4x1xf32>
    %cst_3 = arith.constant 0.001953125 : f32
    %4 = vector.broadcast %cst_3 : f32 to vector<4x1xf32>
    %5 = arith.mulf %3, %4 : vector<4x1xf32>
    %6 = vector.shape_cast %5 : vector<4x1xf32> to vector<1x4x1xf32>
    %7 = vector.broadcast %6 : vector<1x4x1xf32> to vector<2x4x256xf32>
    %8 = arith.subf %0, %7 : vector<2x4x256xf32>
    %9 = arith.mulf %8, %8 : vector<2x4x256xf32>
    %cst_4 = arith.constant dense<0.000000e+00> : vector<2x4xf32>
    %10 = vector.multi_reduction <add>, %9, %cst_4 [2] : vector<2x4x256xf32> to vector<2x4xf32>
    %11 = vector.shape_cast %10 : vector<2x4xf32> to vector<2x4x1xf32>
    %cst_5 = arith.constant dense<0.000000e+00> : vector<4x1xf32>
    %12 = vector.multi_reduction <add>, %11, %cst_5 [0] : vector<2x4x1xf32> to vector<4x1xf32>
    %cst_6 = arith.constant 0.001953125 : f32
    %13 = vector.broadcast %cst_6 : f32 to vector<4x1xf32>
    %14 = arith.mulf %12, %13 : vector<4x1xf32>
    %c0_7 = arith.constant 0 : index
    %15 = memref.load %arg4[%c0_7] : memref<1xf32, #tpu.memory_space<smem>>
    %c0_8 = arith.constant 0 : index
    %c0_9 = arith.constant 0 : index
    %16 = vector.load %arg2[%c0_8, %c0_9] : memref<4x1xf32, #tpu.memory_space<vmem>>, vector<4x1xf32>
    %c0_10 = arith.constant 0 : index
    %c0_11 = arith.constant 0 : index
    %17 = vector.load %arg3[%c0_10, %c0_11] : memref<4x1xf32, #tpu.memory_space<vmem>>, vector<4x1xf32>
    %cst_12 = arith.constant 2.000000e+00 : f32
    %18 = arith.addf %15, %cst_12 : f32
    %cst_13 = arith.constant 1.000000e+00 : f32
    %19 = arith.divf %cst_13, %18 : f32
    %20 = vector.broadcast %15 : f32 to vector<4x1xf32>
    %21 = arith.mulf %20, %16 : vector<4x1xf32>
    %cst_14 = arith.constant 2.000000e+00 : f32
    %22 = vector.broadcast %cst_14 : f32 to vector<4x1xf32>
    %23 = arith.mulf %22, %5 : vector<4x1xf32>
    %24 = arith.addf %21, %23 : vector<4x1xf32>
    %25 = vector.broadcast %19 : f32 to vector<4x1xf32>
    %26 = arith.mulf %24, %25 : vector<4x1xf32>
    %27 = vector.broadcast %15 : f32 to vector<4x1xf32>
    %28 = arith.mulf %17, %27 : vector<4x1xf32>
    %cst_15 = arith.constant 2.000000e+00 : f32
    %29 = vector.broadcast %cst_15 : f32 to vector<4x1xf32>
    %30 = arith.mulf %14, %29 : vector<4x1xf32>
    %31 = arith.addf %28, %30 : vector<4x1xf32>
    %32 = arith.subf %5, %16 : vector<4x1xf32>
    %33 = arith.mulf %32, %32 : vector<4x1xf32>
    %cst_16 = arith.constant 2.000000e+00 : f32
    %34 = arith.mulf %15, %cst_16 : f32
    %35 = arith.mulf %34, %19 : f32
    %36 = vector.broadcast %35 : f32 to vector<4x1xf32>
    %37 = arith.mulf %33, %36 : vector<4x1xf32>
    %38 = arith.addf %31, %37 : vector<4x1xf32>
    %39 = vector.broadcast %19 : f32 to vector<4x1xf32>
    %40 = arith.mulf %38, %39 : vector<4x1xf32>
    %cst_17 = arith.constant 0.00999999977 : f32
    %41 = vector.broadcast %cst_17 : f32 to vector<4x1xf32>
    %42 = arith.maximumf %40, %41 : vector<4x1xf32>
    %43 = math.rsqrt %42 : vector<4x1xf32>
    %44 = vector.shape_cast %26 : vector<4x1xf32> to vector<1x4x1xf32>
    %45 = vector.broadcast %44 : vector<1x4x1xf32> to vector<2x4x256xf32>
    %46 = arith.subf %0, %45 : vector<2x4x256xf32>
    %47 = vector.shape_cast %43 : vector<4x1xf32> to vector<1x4x1xf32>
    %48 = vector.broadcast %47 : vector<1x4x1xf32> to vector<2x4x256xf32>
    %49 = arith.mulf %46, %48 : vector<2x4x256xf32>
    %c0_18 = arith.constant 0 : index
    %c0_19 = arith.constant 0 : index
    %c0_20 = arith.constant 0 : index
    %50 = vector.load %arg5[%c0_18, %c0_19, %c0_20] : memref<2x4x256xf32, #tpu.memory_space<vmem>>, vector<2x4x256xf32>
    tpu.vector_store %arg5[%c0_18, %c0_19, %c0_20], %49 {strides = array<i32>} : memref<2x4x256xf32, #tpu.memory_space<vmem>>, vector<2x4x256xf32>,
    %c0_21 = arith.constant 0 : index
    %c0_22 = arith.constant 0 : index
    %51 = vector.load %arg6[%c0_21, %c0_22] : memref<4x1xf32, #tpu.memory_space<vmem>>, vector<4x1xf32>
    tpu.vector_store %arg6[%c0_21, %c0_22], %26 {strides = array<i32>} : memref<4x1xf32, #tpu.memory_space<vmem>>, vector<4x1xf32>,
    %c0_23 = arith.constant 0 : index
    %c0_24 = arith.constant 0 : index
    %52 = vector.load %arg7[%c0_23, %c0_24] : memref<4x1xf32, #tpu.memory_space<vmem>>, vector<4x1xf32>
    tpu.vector_store %arg7[%c0_23, %c0_24], %40 {strides = array<i32>} : memref<4x1xf32, #tpu.memory_space<vmem>>, vector<4x1xf32>,
    return
  }
  func.func @transform_0(%arg0: i32) -> (i32, i32, i32) {
    %c0_i32 = arith.constant 0 : i32
    %c0_i32_0 = arith.constant 0 : i32
    %c0_i32_1 = arith.constant 0 : i32
    return %c0_i32, %arg0, %c0_i32_0 : i32, i32, i32
  }
  func.func @transform_1(%arg0: i32) -> (i32, i32) {
    %c0_i32 = arith.constant 0 : i32
    %c0_i32_0 = arith.constant 0 : i32
    return %arg0, %c0_i32 : i32, i32
  }
  func.func @transform_2(%arg0: i32) -> (i32, i32) {
    %c0_i32 = arith.constant 0 : i32
    %c0_i32_0 = arith.constant 0 : i32
    return %arg0, %c0_i32 : i32, i32
  }
  func.func @transform_3(%arg0: i32) -> i32 {
    %c0_i32 = arith.constant 0 : i32
    %c0_i32_0 = arith.constant 0 : i32
    return %c0_i32 : i32
  }
  func.func @transform_4(%arg0: i32) -> (i32, i32, i32) {
    %c0_i32 = arith.constant 0 : i32
    %c0_i32_0 = arith.constant 0 : i32
    %c0_i32_1 = arith.constant 0 : i32
    return %c0_i32, %arg0, %c0_i32_0 : i32, i32, i32
  }
  func.func @transform_5(%arg0: i32) -> (i32, i32) {
    %c0_i32 = arith.constant 0 : i32
    %c0_i32_0 = arith.constant 0 : i32
    return %arg0, %c0_i32 : i32, i32
  }
  func.func @transform_6(%arg0: i32) -> (i32, i32) {
    %c0_i32 = arith.constant 0 : i32
    %c0_i32_0 = arith.constant 0 : i32
    return %arg0, %c0_i32 : i32, i32
  }
}

</mosaic_0001>

<llo_original>
// kernel: tpu_custom_call.1
$region0: #{tpu_custom_call.1}
  #allocation0 [shape = 'u32[]', space=smem, size = 0x4, offset = 0x4, fixed_abs, tag = 'smem constant byte address 0x4 - core index']
  #allocation1 [shape = 'u32[144,128]{1,0:T(1,128)}', space=vmem, size = 0x12000, scoped, tag = 'internal scratch']
  #allocation2 [shape = 'f32[1]{0:T(128)S(6)}', space=smem, size = 0x200, scoped, tag = 'scoped memory for tpu_custom_call.1']
  %s0 = inlined_call_operand.hbm [shape: f32[2,4,256], index: 0, kind: input, shape index: {}]
  %s1 = inlined_call_operand.vmem [shape: f32[4,1], index: 1, kind: input, shape index: {}]
  %s2 = inlined_call_operand.vmem [shape: f32[4,1], index: 2, kind: input, shape index: {}]
  %s3 = inlined_call_operand.<no memory space> [shape: f32[1], index: 3, kind: input, shape index: {}]
  %s4 = inlined_call_operand.hbm [shape: f32[2,4,256], index: 4, kind: output, shape index: {0}]
  %s5 = inlined_call_operand.vmem [shape: f32[4,1], index: 5, kind: output, shape index: {1}]
  %s6 = inlined_call_operand.vmem [shape: f32[4,1], index: 6, kind: output, shape index: {2}]
  %7 = xla_tuple %s4, %s5, %s6
  %s8 = sld [smem:[#allocation0]]
  $region46: #{tpu_custom_call.1} parent=0
    _
  %s10 = ssub.s32 1, %s8
  %s11 = scalar_select 0, %s10, %s8
  %12 = sst [smem:[#allocation2]] %s3
  $region1: #{tpu_custom_call.1} parent=0
    #allocation3 [shape = 'u8[8192]{0}', space=vmem, size = 0x2000, scoped, tag = 'input window, operand 0, single buffered']
    #allocation4 [shape = 's32[1]{0}', space=sflag, size = 0x4, scoped, tag = 'scoped memory for tpu_custom_call.1']
    #allocation5 [shape = 's32[1]{0}', space=sflag, size = 0x4, scoped, tag = 'scoped memory for tpu_custom_call.1']
    #allocation6 [shape = 'u8[8192]{0}', space=vmem, size = 0x2000, scoped, tag = 'output window, operand 0, single buffered']
    %13 = vsyncpa [#allocation4], 0
    %14 = vsyncpa [#allocation5], 0
    // Predicated region
    $region2: #{tpu_custom_call.1} parent=1 // pred_check
      _
    $region3: #{tpu_custom_call.1} parent=1 // pred_check_branch
      %16 = sbr.rel (0) target = $region5
    $region4: #{tpu_custom_call.1} parent=1 // pred_region
      %s18 = ssub.s32 256, 256
      %19 = vsyncadd [#allocation4], %s18
      %s20 = sshll.u32 [#allocation3], 4
      %s21 = int_to_ptr.vmem [resolvable:$true] %s20
      %26 = dma.hbm_to_vmem [thread:$0]  %s0, 256, %s21, [#allocation4], 128, 128, 8
    $region5: #{tpu_custom_call.1} parent=1 // pred_fallthru
      _
    // Predicated region
    $region6: #{tpu_custom_call.1} parent=1 // pred_check
      _
    $region7: #{tpu_custom_call.1} parent=1 // pred_check_branch
      %28 = sbr.rel (0) target = $region9
    $region8: #{tpu_custom_call.1} parent=1 // pred_region
      _
    $region9: #{tpu_custom_call.1} parent=1 // pred_fallthru
      _
    // Predicated region
    $region10: #{tpu_custom_call.1} parent=1 // pred_check
      _
    $region11: #{tpu_custom_call.1} parent=1 // pred_check_branch
      %30 = sbr.rel (0) target = $region13
    $region12: #{tpu_custom_call.1} parent=1 // pred_region
      _
    $region13: #{tpu_custom_call.1} parent=1 // pred_fallthru
      _
    // Predicated region
    $region14: #{tpu_custom_call.1} parent=1 // pred_check
      _
    $region15: #{tpu_custom_call.1} parent=1 // pred_check_branch
      %32 = sbr.rel (0) target = $region17
    $region16: #{tpu_custom_call.1} parent=1 // pred_region
      _
    $region17: #{tpu_custom_call.1} parent=1 // pred_fallthru
      _
    // Predicated region
    $region18: #{tpu_custom_call.1} parent=1 // pred_check
      _
    $region19: #{tpu_custom_call.1} parent=1 // pred_check_branch
      %34 = sbr.rel (0) target = $region21
    $region20: #{tpu_custom_call.1} parent=1 // pred_region
      %35 = dma.done [#allocation4], 256
    $region21: #{tpu_custom_call.1} parent=1 // pred_fallthru
      _
    %v36 = vld [vmem:[#allocation3] sm:$0xff]
    %v37 = vld [vmem:[#allocation3 + $0x8] sm:$0xff]
    %v40 = vcombine.high %v36, %v36
    %v41 = vcombine.high %v37, %v37
    %vm44 = vcmask 1043456
    %v45 = vsel %vm44, %v36, 0.0
    %v46 = vsel %vm44, %v40, 0.0
    %v47 = vadd.f32 %v45, %v46
    %48 = vadd.xlane.f32.xlu0 %v47
    %v49 = vpop.xlane.xlu0 %48
    %v50 = vsel %vm44, %v37, 0.0
    %v51 = vsel %vm44, %v41, 0.0
    %v52 = vadd.f32 %v50, %v51
    %53 = vadd.xlane.f32.xlu0 %v52
    %v54 = vpop.xlane.xlu0 %53
    %v55 = vsel %vm44, %v49, 0.0
    %v56 = vsel %vm44, %v54, 0.0
    %v57 = vadd.f32 %v55, %v56
    %v58 = vmul.f32 %v57, 0.001953125
    %v61 = vunpack.c.l.s4 839922192
    %v62 = vunpack.c.0.s8 %v61
    %v63 = vlaneseq
    %v64 = vshrl.u32 %v63, 7
    %v65 = vsub.s32 %v62, %v64
    %v66 = vrot.slane %v58, %v65
    %v68 = vsub.f32 %v36, %v66
    %v69 = vsub.f32 %v37, %v66
    %v70 = vmul.f32 %v68, %v68
    %v71 = vmul.f32 %v69, %v69
    %v74 = vcombine.high %v70, %v70
    %v75 = vcombine.high %v71, %v71
    %v78 = vsel %vm44, %v70, 0.0
    %v79 = vsel %vm44, %v74, 0.0
    %v80 = vadd.f32 %v78, %v79
    %81 = vadd.xlane.f32.xlu0 %v80
    %v82 = vpop.xlane.xlu0 %81
    %v83 = vsel %vm44, %v71, 0.0
    %v84 = vsel %vm44, %v75, 0.0
    %v85 = vadd.f32 %v83, %v84
    %86 = vadd.xlane.f32.xlu0 %v85
    %v87 = vpop.xlane.xlu0 %86
    %v88 = vsel %vm44, %v82, 0.0
    %v89 = vsel %vm44, %v87, 0.0
    %v90 = vadd.f32 %v88, %v89
    %v91 = vmul.f32 %v90, 0.001953125
    %s92 = sld [smem:[#allocation2]]
    %v93 = vld [vmem:[%s1] sm:$0xf]
    %v94 = vld [vmem:[%s2] sm:$0xf]
    %s95 = sadd.f32 %s92, 2.0
    %v96 = vstv %s95
    %v97 = vrcp.pop %v96
    %s98 = vtos %v97
    %v99 = vstv %s92
    %v100 = vmul.f32 %v99, %v93
    %v101 = vmul.f32 %v58, 2.0
    %v102 = vadd.f32 %v100, %v101
    %v103 = vstv %s98
    %v104 = vmul.f32 %v102, %v103
    %v105 = vmul.f32 %v94, %v99
    %v106 = vmul.f32 %v91, 2.0
    %v107 = vadd.f32 %v105, %v106
    %v108 = vsub.f32 %v58, %v93
    %v109 = vmul.f32 %v108, %v108
    %s110 = smul.f32 %s92, 2.0
    %s111 = smul.f32 %s110, %s98
    %v112 = vstv %s111
    %v113 = vmul.f32 %v109, %v112
    %v114 = vadd.f32 %v107, %v113
    %v115 = vmul.f32 %v114, %v103
    %v116 = vmax.f32 %v115, 0.01
    %v117 = vrsqrt.pop %v116
    %119 = vset.pattern.permute.xlu0 0
    %120 = vperm.xlu0 %119, %v104
    %v121 = vpop.permute.xlu0 %120
    %v123 = vunpack.c.l.s4 839922192
    %v124 = vunpack.c.0.s8 %v123
    %v125 = vlaneseq
    %v126 = vshrl.u32 %v125, 7
    %v127 = vsub.s32 %v124, %v126
    %v128 = vrot.slane %v121, %v127
    %v130 = vsub.f32 %v36, %v128
    %v131 = vsub.f32 %v37, %v128
    %133 = vset.pattern.permute.xlu0 0
    %134 = vperm.xlu0 %133, %v117
    %v135 = vpop.permute.xlu0 %134
    %v137 = vunpack.c.l.s4 839922192
    %v138 = vunpack.c.0.s8 %v137
    %v139 = vlaneseq
    %v140 = vshrl.u32 %v139, 7
    %v141 = vsub.s32 %v138, %v140
    %v142 = vrot.slane %v135, %v141
    %v144 = vmul.f32 %v130, %v142
    %v145 = vmul.f32 %v131, %v142
    %146 = vst [vmem:[#allocation6] sm:$0xff] %v144
    %147 = vst [vmem:[#allocation6 + $0x8] sm:$0xff] %v145
    %vm148 = vcmask 3072
    %149 = vst.msk [vmem:[%s5] sm:$0xf] %vm148, %v104
    %150 = vst.msk [vmem:[%s6] sm:$0xf] %vm148, %v115
    // Predicated region
    $region22: #{tpu_custom_call.1} parent=1 // pred_check
      _
    $region23: #{tpu_custom_call.1} parent=1 // pred_check_branch
      %152 = sbr.rel (0) target = $region25
    $region24: #{tpu_custom_call.1} parent=1 // pred_region
      %s154 = ssub.s32 256, 256
      %155 = vsyncadd [#allocation5], %s154
      %s156 = sshll.u32 [#allocation6], 4
      %s157 = int_to_ptr.vmem [resolvable:$true] %s156
      %162 = dma.vmem_to_hbm [thread:$0]  %s157, 256, %s4, [#allocation5], 128, 128, 8
    $region25: #{tpu_custom_call.1} parent=1 // pred_fallthru
      _
    // Predicated region
    $region26: #{tpu_custom_call.1} parent=1 // pred_check
      _
    $region27: #{tpu_custom_call.1} parent=1 // pred_check_branch
      %164 = sbr.rel (0) target = $region29
    $region28: #{tpu_custom_call.1} parent=1 // pred_region
      _
    $region29: #{tpu_custom_call.1} parent=1 // pred_fallthru
      _
    // Predicated region
    $region30: #{tpu_custom_call.1} parent=1 // pred_check
      _
    $region31: #{tpu_custom_call.1} parent=1 // pred_check_branch
      %166 = sbr.rel (0) target = $region33
    $region32: #{tpu_custom_call.1} parent=1 // pred_region
      _
    $region33: #{tpu_custom_call.1} parent=1 // pred_fallthru
      _
    // Predicated region
    $region34: #{tpu_custom_call.1} parent=1 // pred_check
      _
    $region35: #{tpu_custom_call.1} parent=1 // pred_check_branch
      %168 = sbr.rel (0) target = $region37
    $region36: #{tpu_custom_call.1} parent=1 // pred_region
      %169 = dma.done [#allocation5], 256
    $region37: #{tpu_custom_call.1} parent=1 // pred_fallthru
      _
    // Predicated region
    $region38: #{tpu_custom_call.1} parent=1 // pred_check
      _
    $region39: #{tpu_custom_call.1} parent=1 // pred_check_branch
      %171 = sbr.rel (0) target = $region41
    $region40: #{tpu_custom_call.1} parent=1 // pred_region
      _
    $region41: #{tpu_custom_call.1} parent=1 // pred_fallthru
      _
    // Predicated region
    $region42: #{tpu_custom_call.1} parent=1 // pred_check
      _
    $region43: #{tpu_custom_call.1} parent=1 // pred_check_branch
      %173 = sbr.rel (0) target = $region45
    $region44: #{tpu_custom_call.1} parent=1 // pred_region
      _
    $region45: #{tpu_custom_call.1} parent=1 // pred_fallthru
      _
    %174 = vsyncpa [#allocation4], 1
    %175 = vsyncpa [#allocation5], 1

</llo_original>
